<compile_context>
chip_gen: v6e
topology: v6e:2x2x1
jax: 0.10.0
libtpu: 0.0.40
codegen_flags: <defaults>
</compile_context>

<pallas_src>
import functools

import jax
import jax.numpy as jnp
from jax.experimental import pallas as pl
from jax.experimental.pallas import tpu as pltpu

EPS = 1e-5


# ---------------------------------------------------------------------------
# Fused kernel: im2col build (once per sample) + single MXU matmul + GroupNorm + ReLU.
# Grid = (sample n, group g).  One GroupNorm group of Cg channels per step.
# ---------------------------------------------------------------------------
def _fused_conv_gn_relu_kernel(x_ref, w_ref, g_ref, b_ref, cm_ref, o_ref, col_ref,
                               *, K, W, HWd, Cin_p, pad, inv_count):
    grp = pl.program_id(1)

    # ---- im2col build: 9 statically shifted lane slices -> (K*K*Cin_p, HWd) bf16 scratch ----
    # Built only at g == 0; groups g > 0 of the same sample reuse the persistent scratch.
    @pl.when(grp == 0)
    def _build():
        for ky in range(K):
            for kx in range(K):
                k = ky * K + kx
                off = ky * W + kx                           # static lane offset of tap k
                tap = x_ref[0, :, pl.ds(off, HWd)]          # (Cin_p, HWd) bf16
                if kx != pad:                               # zero columns that wrap across a row
                    tap = tap * cm_ref[pl.ds(kx, 1), :]
                col_ref[pl.ds(k * Cin_p, Cin_p), :] = tap

    # ---- conv: ONE bf16 MXU matmul, contraction depth K*K*Cin_p, f32 accumulation ----
    acc = jnp.dot(w_ref[...], col_ref[...],
                  preferred_element_type=jnp.float32)       # (Cg, HWd) f32

    # ---- GroupNorm over this group's (Cg, H*W) block (all columns valid, no mask needed) ----
    s1 = jnp.sum(jnp.sum(acc, axis=1, keepdims=True), axis=0, keepdims=True)        # (1, 1)
    s2 = jnp.sum(jnp.sum(acc * acc, axis=1, keepdims=True), axis=0, keepdims=True)  # (1, 1)
    mean = s1 * inv_count
    var = jnp.maximum(s2 * inv_count - mean * mean, 0.0)    # single-pass var, clamped at 0
    inv = jax.lax.rsqrt(var + EPS)

    scale = g_ref[...] * inv                                # (Cg, 1) per-channel affine
    shift = b_ref[...] - mean * scale
    o_ref[0] = jnp.maximum(acc * scale + shift, 0.0).astype(o_ref.dtype)


# ---------------------------------------------------------------------------
# Wrapper: layout plumbing only (no HBM im2col, no output transpose, no output slice/copy).
# ---------------------------------------------------------------------------
@functools.partial(jax.jit, static_argnames=("kernel_size", "stride", "pad"))
def conv_gn_relu(x, weight, gamma, beta, *, kernel_size=3, stride=1, pad=1):
    """Forward pass of ConvGnReLU. x: (N, Cin, H, W) NCHW. Returns (N, Cout, H, W) f32."""
    N, Cin, H, W = x.shape
    Cout = weight.shape[0]
    K = kernel_size
    assert stride == 1 and 2 * pad == K - 1, "kernel implements the module's 'same'-conv path"
    G = max(1, Cout // 8)
    assert Cout % G == 0
    Cg = Cout // G

    HWd = H * W                                    # dense flat spatial (lane axis everywhere)
    Hp = H + 2 * pad
    Cin_p = ((Cin + 7) // 8) * 8                   # sublane-align channels (zero-padded)
    KKC = K * K * Cin_p
    Lslab = ((2 * pad + Hp * W + 127) // 128) * 128  # front guard + padded image + back guard

    # ---- input slab: vertically padded, channels-on-sublanes, spatial-on-lanes, bf16 ----
    xv = jnp.pad(x, ((0, 0), (0, 0), (pad, pad), (0, 0))).reshape(N, Cin, Hp * W)
    x_slab = jnp.pad(xv, ((0, 0), (0, Cin_p - Cin),
                          (pad, Lslab - pad - Hp * W))).astype(jnp.bfloat16)  # (N, Cin_p, Lslab)

    # weight reshaped to match im2col row order (ky*K + kx)*Cin_p + i
    w_p = jnp.pad(weight, ((0, 0), (0, Cin_p - Cin), (0, 0), (0, 0)))
    w2 = w_p.transpose(0, 2, 3, 1).reshape(Cout, KKC).astype(jnp.bfloat16)    # (Cout, KKC)

    gamma2 = gamma.reshape(Cout, 1).astype(jnp.float32)
    beta2 = beta.reshape(Cout, 1).astype(jnp.float32)

    # per-kx column-validity masks: zero the taps that would read across an image-row boundary
    wo_idx = jnp.arange(HWd, dtype=jnp.int32) % W
    cm = jnp.stack([((wo_idx + (kx - pad) >= 0) & (wo_idx + (kx - pad) < W))
                    for kx in range(K)], axis=0).astype(jnp.bfloat16)         # (K, HWd)

    kernel = functools.partial(_fused_conv_gn_relu_kernel, K=K, W=W, HWd=HWd,
                               Cin_p=Cin_p, pad=pad, inv_count=1.0 / float(Cg * HWd))

    out_flat = pl.pallas_call(
        kernel,
        out_shape=jax.ShapeDtypeStruct((N, Cout, HWd), jnp.float32),
        grid_spec=pltpu.PrefetchScalarGridSpec(
            num_scalar_prefetch=0,
            grid=(N, G),
            in_specs=[
                pl.BlockSpec((1, Cin_p, Lslab), lambda n, g: (n, 0, 0)),  # slab (same block ∀ g)
                pl.BlockSpec((Cg, KKC), lambda n, g: (g, 0)),             # this group's weights
                pl.BlockSpec((Cg, 1), lambda n, g: (g, 0)),               # gamma
                pl.BlockSpec((Cg, 1), lambda n, g: (g, 0)),               # beta
                pl.BlockSpec((K, HWd), lambda n, g: (0, 0)),              # edge masks (resident)
            ],
            out_specs=pl.BlockSpec((1, Cg, HWd), lambda n, g: (n, g, 0)), # lane-dense output
            scratch_shapes=[pltpu.VMEM((KKC, HWd), jnp.bfloat16)],        # per-sample im2col
        ),
        compiler_params=pltpu.CompilerParams(
            dimension_semantics=("parallel", "arbitrary"),  # g carries the im2col scratch
            vmem_limit_bytes=32 * 1024 * 1024,
        ),
    )(x_slab, w2, gamma2, beta2, cm)

    # dense layout -> free metadata reshape (no wrap-column strip, no extra HBM pass)
    return out_flat.reshape(N, Cout, H, W)


# ---------------------------------------------------------------------------
# Pure-JAX reference (same bf16-rounded operands, f32 math, two-pass variance).
# ---------------------------------------------------------------------------
def _reference(x, weight, gamma, beta, pad=1):
    xb = x.astype(jnp.bfloat16).astype(jnp.float32)
    wb = weight.astype(jnp.bfloat16).astype(jnp.float32)
    N = x.shape[0]
    Cout = weight.shape[0]
    G = max(1, Cout // 8)
    Cg = Cout // G
    y = jax.lax.conv_general_dilated(
        xb, wb, window_strides=(1, 1), padding=((pad, pad), (pad, pad)),
        dimension_numbers=("NCHW", "OIHW", "NCHW"))
    Ho, Wo = y.shape[2], y.shape[3]
    yg = y.reshape(N, G, Cg, Ho, Wo)
    mean = yg.mean(axis=(2, 3, 4), keepdims=True)
    var = ((yg - mean) ** 2).mean(axis=(2, 3, 4), keepdims=True)
    yn = ((yg - mean) / jnp.sqrt(var + EPS)).reshape(N, Cout, Ho, Wo)
    yn = yn * gamma[None, :, None, None] + beta[None, :, None, None]
    return jnp.maximum(yn, 0.0)


if __name__ == "__main__":
    key = jax.random.PRNGKey(0)
    k_x, k_w, k_g, k_b = jax.random.split(key, 4)

    N, Cin, H, W = 2, 4, 16, 16
    Cout, K = 16, 3

    x = jax.random.normal(k_x, (N, Cin, H, W), dtype=jnp.float32)
    # deterministic conv weight (uniform in +-1/sqrt(fan_in), akin to PyTorch default)
    bound = 1.0 / (Cin * K * K) ** 0.5
    weight = jax.random.uniform(k_w, (Cout, Cin, K, K), dtype=jnp.float32,
                                minval=-bound, maxval=bound)
    # GroupNorm affine params (perturbed from defaults to exercise the per-channel path)
    gamma = 1.0 + 0.1 * jax.random.normal(k_g, (Cout,), dtype=jnp.float32)
    beta = 0.1 * jax.random.normal(k_b, (Cout,), dtype=jnp.float32)

    out = conv_gn_relu(x, weight, gamma, beta, kernel_size=K, stride=1, pad=1)
    out = jax.block_until_ready(out)

    ref = _reference(x, weight, gamma, beta, pad=1)
    assert out.shape == (N, Cout, H, W), out.shape
    err = float(jnp.max(jnp.abs(out - ref)))
    assert err < 1e-3, err

    print("KERNEL_OK")
</pallas_src>

<mosaic_0001>
module attributes {stable_mosaic.version = 11 : i64} {
  func.func @_fused_conv_gn_relu_kernel(%arg0: i32, %arg1: i32, %arg2: memref<1x8x384xbf16, #tpu.memory_space<vmem>>, %arg3: memref<8x72xbf16, #tpu.memory_space<vmem>>, %arg4: memref<8x1xf32, #tpu.memory_space<vmem>>, %arg5: memref<8x1xf32, #tpu.memory_space<vmem>>, %arg6: memref<3x256xbf16, #tpu.memory_space<vmem>>, %arg7: memref<1x8x256xf32, #tpu.memory_space<vmem>>, %arg8: memref<72x256xbf16, #tpu.memory_space<vmem>>) attributes {dimension_semantics = [#tpu.dimension_semantics<parallel>, #tpu.dimension_semantics<arbitrary>], iteration_bounds = array<i64: 2, 2>, scalar_prefetch = 0 : i64, scratch_operands = 1 : i64, tpu.core_type = #tpu.core_type<tc>, window_params = [{transform_indices = @transform_0, window_bounds = array<i64: 1, 8, 384>}, {transform_indices = @transform_1, window_bounds = array<i64: 8, 72>}, {transform_indices = @transform_2, window_bounds = array<i64: 8, 1>}, {transform_indices = @transform_3, window_bounds = array<i64: 8, 1>}, {pipeline_mode = #tpu.pipeline_mode<synchronous>, transform_indices = @transform_4, window_bounds = array<i64: 3, 256>}, {transform_indices = @transform_5, window_bounds = array<i64: 1, 8, 256>}]} {
    %c0_i32 = arith.constant 0 : i32
    %0 = arith.cmpi eq, %arg1, %c0_i32 : i32
    %1 = arith.extui %0 : i1 to i32
    %c0_i32_0 = arith.constant 0 : i32
    %2 = arith.cmpi ne, %1, %c0_i32_0 : i32
    scf.if %2 {
      %c0_20 = arith.constant 0 : index
      %c0_21 = arith.constant 0 : index
      %c0_22 = arith.constant 0 : index
      %42 = vector.load %arg2[%c0_20, %c0_21, %c0_22] : memref<1x8x384xbf16, #tpu.memory_space<vmem>>, vector<1x8x256xbf16>
      %43 = vector.shape_cast %42 : vector<1x8x256xbf16> to vector<8x256xbf16>
      %c0_23 = arith.constant 0 : index
      %c0_24 = arith.constant 0 : index
      %44 = vector.load %arg6[%c0_23, %c0_24] : memref<3x256xbf16, #tpu.memory_space<vmem>>, vector<1x256xbf16>
      %45 = vector.broadcast %44 : vector<1x256xbf16> to vector<8x256xbf16>
      %46 = arith.mulf %43, %45 : vector<8x256xbf16>
      %c0_25 = arith.constant 0 : index
      %c0_26 = arith.constant 0 : index
      %47 = vector.load %arg8[%c0_25, %c0_26] : memref<72x256xbf16, #tpu.memory_space<vmem>>, vector<8x256xbf16>
      tpu.vector_store %arg8[%c0_25, %c0_26], %46 {strides = array<i32>} : memref<72x256xbf16, #tpu.memory_space<vmem>>, vector<8x256xbf16>,
      %c0_27 = arith.constant 0 : index
      %c0_28 = arith.constant 0 : index
      %c1 = arith.constant 1 : index
      %48 = vector.load %arg2[%c0_27, %c0_28, %c1] : memref<1x8x384xbf16, #tpu.memory_space<vmem>>, vector<1x8x256xbf16>
      %49 = vector.shape_cast %48 : vector<1x8x256xbf16> to vector<8x256xbf16>
      %c8 = arith.constant 8 : index
      %c0_29 = arith.constant 0 : index
      %50 = vector.load %arg8[%c8, %c0_29] : memref<72x256xbf16, #tpu.memory_space<vmem>>, vector<8x256xbf16>
      tpu.vector_store %arg8[%c8, %c0_29], %49 {strides = array<i32>} : memref<72x256xbf16, #tpu.memory_space<vmem>>, vector<8x256xbf16>,
      %c0_30 = arith.constant 0 : index
      %c0_31 = arith.constant 0 : index
      %c2 = arith.constant 2 : index
      %51 = vector.load %arg2[%c0_30, %c0_31, %c2] : memref<1x8x384xbf16, #tpu.memory_space<vmem>>, vector<1x8x256xbf16>
      %52 = vector.shape_cast %51 : vector<1x8x256xbf16> to vector<8x256xbf16>
      %c2_32 = arith.constant 2 : index
      %c0_33 = arith.constant 0 : index
      %53 = vector.load %arg6[%c2_32, %c0_33] : memref<3x256xbf16, #tpu.memory_space<vmem>>, vector<1x256xbf16>
      %54 = vector.broadcast %53 : vector<1x256xbf16> to vector<8x256xbf16>
      %55 = arith.mulf %52, %54 : vector<8x256xbf16>
      %c16 = arith.constant 16 : index
      %c0_34 = arith.constant 0 : index
      %56 = vector.load %arg8[%c16, %c0_34] : memref<72x256xbf16, #tpu.memory_space<vmem>>, vector<8x256xbf16>
      tpu.vector_store %arg8[%c16, %c0_34], %55 {strides = array<i32>} : memref<72x256xbf16, #tpu.memory_space<vmem>>, vector<8x256xbf16>,
      %c0_35 = arith.constant 0 : index
      %c0_36 = arith.constant 0 : index
      %c16_37 = arith.constant 16 : index
      %57 = vector.load %arg2[%c0_35, %c0_36, %c16_37] : memref<1x8x384xbf16, #tpu.memory_space<vmem>>, vector<1x8x256xbf16>
      %58 = vector.shape_cast %57 : vector<1x8x256xbf16> to vector<8x256xbf16>
      %c0_38 = arith.constant 0 : index
      %c0_39 = arith.constant 0 : index
      %59 = vector.load %arg6[%c0_38, %c0_39] : memref<3x256xbf16, #tpu.memory_space<vmem>>, vector<1x256xbf16>
      %60 = vector.broadcast %59 : vector<1x256xbf16> to vector<8x256xbf16>
      %61 = arith.mulf %58, %60 : vector<8x256xbf16>
      %c24 = arith.constant 24 : index
      %c0_40 = arith.constant 0 : index
      %62 = vector.load %arg8[%c24, %c0_40] : memref<72x256xbf16, #tpu.memory_space<vmem>>, vector<8x256xbf16>
      tpu.vector_store %arg8[%c24, %c0_40], %61 {strides = array<i32>} : memref<72x256xbf16, #tpu.memory_space<vmem>>, vector<8x256xbf16>,
      %c0_41 = arith.constant 0 : index
      %c0_42 = arith.constant 0 : index
      %c17 = arith.constant 17 : index
      %63 = vector.load %arg2[%c0_41, %c0_42, %c17] : memref<1x8x384xbf16, #tpu.memory_space<vmem>>, vector<1x8x256xbf16>
      %64 = vector.shape_cast %63 : vector<1x8x256xbf16> to vector<8x256xbf16>
      %c32 = arith.constant 32 : index
      %c0_43 = arith.constant 0 : index
      %65 = vector.load %arg8[%c32, %c0_43] : memref<72x256xbf16, #tpu.memory_space<vmem>>, vector<8x256xbf16>
      tpu.vector_store %arg8[%c32, %c0_43], %64 {strides = array<i32>} : memref<72x256xbf16, #tpu.memory_space<vmem>>, vector<8x256xbf16>,
      %c0_44 = arith.constant 0 : index
      %c0_45 = arith.constant 0 : index
      %c18 = arith.constant 18 : index
      %66 = vector.load %arg2[%c0_44, %c0_45, %c18] : memref<1x8x384xbf16, #tpu.memory_space<vmem>>, vector<1x8x256xbf16>
      %67 = vector.shape_cast %66 : vector<1x8x256xbf16> to vector<8x256xbf16>
      %c2_46 = arith.constant 2 : index
      %c0_47 = arith.constant 0 : index
      %68 = vector.load %arg6[%c2_46, %c0_47] : memref<3x256xbf16, #tpu.memory_space<vmem>>, vector<1x256xbf16>
      %69 = vector.broadcast %68 : vector<1x256xbf16> to vector<8x256xbf16>
      %70 = arith.mulf %67, %69 : vector<8x256xbf16>
      %c40 = arith.constant 40 : index
      %c0_48 = arith.constant 0 : index
      %71 = vector.load %arg8[%c40, %c0_48] : memref<72x256xbf16, #tpu.memory_space<vmem>>, vector<8x256xbf16>
      tpu.vector_store %arg8[%c40, %c0_48], %70 {strides = array<i32>} : memref<72x256xbf16, #tpu.memory_space<vmem>>, vector<8x256xbf16>,
      %c0_49 = arith.constant 0 : index
      %c0_50 = arith.constant 0 : index
      %c32_51 = arith.constant 32 : index
      %72 = vector.load %arg2[%c0_49, %c0_50, %c32_51] : memref<1x8x384xbf16, #tpu.memory_space<vmem>>, vector<1x8x256xbf16>
      %73 = vector.shape_cast %72 : vector<1x8x256xbf16> to vector<8x256xbf16>
      %c0_52 = arith.constant 0 : index
      %c0_53 = arith.constant 0 : index
      %74 = vector.load %arg6[%c0_52, %c0_53] : memref<3x256xbf16, #tpu.memory_space<vmem>>, vector<1x256xbf16>
      %75 = vector.broadcast %74 : vector<1x256xbf16> to vector<8x256xbf16>
      %76 = arith.mulf %73, %75 : vector<8x256xbf16>
      %c48 = arith.constant 48 : index
      %c0_54 = arith.constant 0 : index
      %77 = vector.load %arg8[%c48, %c0_54] : memref<72x256xbf16, #tpu.memory_space<vmem>>, vector<8x256xbf16>
      tpu.vector_store %arg8[%c48, %c0_54], %76 {strides = array<i32>} : memref<72x256xbf16, #tpu.memory_space<vmem>>, vector<8x256xbf16>,
      %c0_55 = arith.constant 0 : index
      %c0_56 = arith.constant 0 : index
      %c33 = arith.constant 33 : index
      %78 = vector.load %arg2[%c0_55, %c0_56, %c33] : memref<1x8x384xbf16, #tpu.memory_space<vmem>>, vector<1x8x256xbf16>
      %79 = vector.shape_cast %78 : vector<1x8x256xbf16> to vector<8x256xbf16>
      %c56 = arith.constant 56 : index
      %c0_57 = arith.constant 0 : index
      %80 = vector.load %arg8[%c56, %c0_57] : memref<72x256xbf16, #tpu.memory_space<vmem>>, vector<8x256xbf16>
      tpu.vector_store %arg8[%c56, %c0_57], %79 {strides = array<i32>} : memref<72x256xbf16, #tpu.memory_space<vmem>>, vector<8x256xbf16>,
      %c0_58 = arith.constant 0 : index
      %c0_59 = arith.constant 0 : index
      %c34 = arith.constant 34 : index
      %81 = vector.load %arg2[%c0_58, %c0_59, %c34] : memref<1x8x384xbf16, #tpu.memory_space<vmem>>, vector<1x8x256xbf16>
      %82 = vector.shape_cast %81 : vector<1x8x256xbf16> to vector<8x256xbf16>
      %c2_60 = arith.constant 2 : index
      %c0_61 = arith.constant 0 : index
      %83 = vector.load %arg6[%c2_60, %c0_61] : memref<3x256xbf16, #tpu.memory_space<vmem>>, vector<1x256xbf16>
      %84 = vector.broadcast %83 : vector<1x256xbf16> to vector<8x256xbf16>
      %85 = arith.mulf %82, %84 : vector<8x256xbf16>
      %c64 = arith.constant 64 : index
      %c0_62 = arith.constant 0 : index
      %86 = vector.load %arg8[%c64, %c0_62] : memref<72x256xbf16, #tpu.memory_space<vmem>>, vector<8x256xbf16>
      tpu.vector_store %arg8[%c64, %c0_62], %85 {strides = array<i32>} : memref<72x256xbf16, #tpu.memory_space<vmem>>, vector<8x256xbf16>,
    } else {
    }
    %c0 = arith.constant 0 : index
    %c0_1 = arith.constant 0 : index
    %3 = vector.load %arg3[%c0, %c0_1] : memref<8x72xbf16, #tpu.memory_space<vmem>>, vector<8x72xbf16>
    %c0_2 = arith.constant 0 : index
    %c0_3 = arith.constant 0 : index
    %4 = vector.load %arg8[%c0_2, %c0_3] : memref<72x256xbf16, #tpu.memory_space<vmem>>, vector<72x256xbf16>
    %cst = arith.constant dense<0.000000e+00> : vector<8x256xf32>
    %5 = tpu.matmul %3, %4, %cst {dimension_numbers = #tpu.dot_dimension_numbers<[1], [0], [0], [1], [0, 0, 1, 1], [], []>} : vector<8x72xbf16>, vector<72x256xbf16>, vector<8x256xf32> -> vector<8x256xf32>
    %cst_4 = arith.constant dense<0.000000e+00> : vector<8xf32>
    %6 = vector.multi_reduction <add>, %5, %cst_4 [1] : vector<8x256xf32> to vector<8xf32>
    %7 = vector.shape_cast %6 : vector<8xf32> to vector<8x1xf32>
    %cst_5 = arith.constant dense<0.000000e+00> : vector<1xf32>
    %8 = vector.multi_reduction <add>, %7, %cst_5 [0] : vector<8x1xf32> to vector<1xf32>
    %9 = vector.shape_cast %8 : vector<1xf32> to vector<1x1xf32>
    %10 = arith.mulf %5, %5 : vector<8x256xf32>
    %cst_6 = arith.constant dense<0.000000e+00> : vector<8xf32>
    %11 = vector.multi_reduction <add>, %10, %cst_6 [1] : vector<8x256xf32> to vector<8xf32>
    %12 = vector.shape_cast %11 : vector<8xf32> to vector<8x1xf32>
    %cst_7 = arith.constant dense<0.000000e+00> : vector<1xf32>
    %13 = vector.multi_reduction <add>, %12, %cst_7 [0] : vector<8x1xf32> to vector<1xf32>
    %14 = vector.shape_cast %13 : vector<1xf32> to vector<1x1xf32>
    %cst_8 = arith.constant 4.8828125E-4 : f32
    %15 = vector.broadcast %cst_8 : f32 to vector<1x1xf32>
    %16 = arith.mulf %9, %15 : vector<1x1xf32>
    %cst_9 = arith.constant 4.8828125E-4 : f32
    %17 = vector.broadcast %cst_9 : f32 to vector<1x1xf32>
    %18 = arith.mulf %14, %17 : vector<1x1xf32>
    %19 = arith.mulf %16, %16 : vector<1x1xf32>
    %20 = arith.subf %18, %19 : vector<1x1xf32>
    %cst_10 = arith.constant 0.000000e+00 : f32
    %21 = vector.broadcast %cst_10 : f32 to vector<1x1xf32>
    %22 = arith.maximumf %20, %21 : vector<1x1xf32>
    %cst_11 = arith.constant 9.99999974E-6 : f32
    %23 = vector.broadcast %cst_11 : f32 to vector<1x1xf32>
    %24 = arith.addf %22, %23 : vector<1x1xf32>
    %25 = math.rsqrt %24 : vector<1x1xf32>
    %c0_12 = arith.constant 0 : index
    %c0_13 = arith.constant 0 : index
    %26 = vector.load %arg4[%c0_12, %c0_13] : memref<8x1xf32, #tpu.memory_space<vmem>>, vector<8x1xf32>
    %27 = vector.broadcast %25 : vector<1x1xf32> to vector<8x1xf32>
    %28 = arith.mulf %26, %27 : vector<8x1xf32>
    %c0_14 = arith.constant 0 : index
    %c0_15 = arith.constant 0 : index
    %29 = vector.load %arg5[%c0_14, %c0_15] : memref<8x1xf32, #tpu.memory_space<vmem>>, vector<8x1xf32>
    %30 = vector.broadcast %16 : vector<1x1xf32> to vector<8x1xf32>
    %31 = arith.mulf %30, %28 : vector<8x1xf32>
    %32 = arith.subf %29, %31 : vector<8x1xf32>
    %33 = vector.broadcast %28 : vector<8x1xf32> to vector<8x256xf32>
    %34 = arith.mulf %5, %33 : vector<8x256xf32>
    %35 = vector.broadcast %32 : vector<8x1xf32> to vector<8x256xf32>
    %36 = arith.addf %34, %35 : vector<8x256xf32>
    %cst_16 = arith.constant 0.000000e+00 : f32
    %37 = vector.broadcast %cst_16 : f32 to vector<8x256xf32>
    %38 = arith.maximumf %36, %37 : vector<8x256xf32>
    %c0_17 = arith.constant 0 : index
    %c0_18 = arith.constant 0 : index
    %c0_19 = arith.constant 0 : index
    %39 = vector.load %arg7[%c0_17, %c0_18, %c0_19] : memref<1x8x256xf32, #tpu.memory_space<vmem>>, vector<1x8x256xf32>
    %40 = vector.shape_cast %39 : vector<1x8x256xf32> to vector<8x256xf32>
    %41 = vector.shape_cast %38 : vector<8x256xf32> to vector<1x8x256xf32>
    tpu.vector_store %arg7[%c0_17, %c0_18, %c0_19], %41 {strides = array<i32>} : memref<1x8x256xf32, #tpu.memory_space<vmem>>, vector<1x8x256xf32>,
    return
  }
  func.func @transform_0(%arg0: i32, %arg1: i32) -> (i32, i32, i32) {
    %c0_i32 = arith.constant 0 : i32
    %c0_i32_0 = arith.constant 0 : i32
    %c0_i32_1 = arith.constant 0 : i32
    return %arg0, %c0_i32, %c0_i32_0 : i32, i32, i32
  }
  func.func @transform_1(%arg0: i32, %arg1: i32) -> (i32, i32) {
    %c0_i32 = arith.constant 0 : i32
    %c0_i32_0 = arith.constant 0 : i32
    return %arg1, %c0_i32 : i32, i32
  }
  func.func @transform_2(%arg0: i32, %arg1: i32) -> (i32, i32) {
    %c0_i32 = arith.constant 0 : i32
    %c0_i32_0 = arith.constant 0 : i32
    return %arg1, %c0_i32 : i32, i32
  }
  func.func @transform_3(%arg0: i32, %arg1: i32) -> (i32, i32) {
    %c0_i32 = arith.constant 0 : i32
    %c0_i32_0 = arith.constant 0 : i32
    return %arg1, %c0_i32 : i32, i32
  }
  func.func @transform_4(%arg0: i32, %arg1: i32) -> (i32, i32) {
    %c0_i32 = arith.constant 0 : i32
    %c0_i32_0 = arith.constant 0 : i32
    %c0_i32_1 = arith.constant 0 : i32
    return %c0_i32, %c0_i32_0 : i32, i32
  }
  func.func @transform_5(%arg0: i32, %arg1: i32) -> (i32, i32, i32) {
    %c0_i32 = arith.constant 0 : i32
    %c0_i32_0 = arith.constant 0 : i32
    return %arg0, %arg1, %c0_i32 : i32, i32, i32
  }
}

</mosaic_0001>

<llo_original>
// kernel: conv_gn_relu.1
$region0: #{conv_gn_relu.1}
  #allocation0 [shape = 'u32[]', space=smem, size = 0x4, offset = 0x4, fixed_abs, tag = 'smem constant byte address 0x4 - core index']
  #allocation1 [shape = 'u32[144,128]{1,0:T(1,128)}', space=vmem, size = 0x12000, scoped, tag = 'internal scratch']
  #allocation2 [shape = 'bf16[72,256]{1,0:T(8,128)(2,1)}', space=vmem, size = 0x9000, scoped, tag = 'scratch operand']
  %s0 = inlined_call_operand.vmem [shape: bf16[2,8,384], index: 0, kind: input, shape index: {}]
  %s1 = inlined_call_operand.vmem [shape: bf16[16,72], index: 1, kind: input, shape index: {}]
  %s2 = inlined_call_operand.vmem [shape: f32[16,1], index: 2, kind: input, shape index: {}]
  %s3 = inlined_call_operand.vmem [shape: f32[16,1], index: 3, kind: input, shape index: {}]
  %s4 = inlined_call_operand.vmem [shape: bf16[3,256], index: 4, kind: input, shape index: {}]
  %s5 = inlined_call_operand.vmem [shape: f32[2,16,256], index: 5, kind: output, shape index: {}]
  %s6 = sld [smem:[#allocation0]]
  $region57: #{conv_gn_relu.1} parent=0
    _
  %s8 = ssub.s32 1, %s6
  %s9 = scalar_select 0, %s8, %s6
  loop: start=0, step=1, limit=6
  $region2: #{conv_gn_relu.1} parent=0 // loop_pre_header
    _
  $region3: #{conv_gn_relu.1} parent=0 // loop_header
    %s11 = sphi 0, %s15
    %p12 = scmp.ge.s32.totalorder %s11, 6
    %s18 = sphi 0, %s30
    %s19 = sphi 0, %s26
    %s20 = sphi 0, %s18
    %s21 = sphi 0, %s19
    %s22 = sphi 0, %s20
    %s23 = sphi 0, %s21
    %s33 = sphi 0, %s35
    %s36 = sphi 0, %s33
    %s37 = sphi 0, %s36
    %s53 = sphi 0, %s37
    %s59 = sphi 0, %s61
    %s62 = sphi 0, %s59
    %s63 = sphi 0, %s62
    %s79 = sphi 0, %s63
    %s85 = sphi 0, %s87
    %s88 = sphi 0, %s85
    %s89 = sphi 0, %s88
    %s105 = sphi 0, %s89
    %s111 = sphi 0, %s113
    %s114 = sphi 0, %s111
    %s115 = sphi 0, %s114
    %s131 = sphi 0, %s115
    %s135 = sphi 0, %s135
    %s137 = sphi 0, %s135
    %s138 = sphi 0, %s137
    %s152 = sphi 0, %s138
    %s160 = sphi 0, %s162
    %s163 = sphi 0, %s160
    %s164 = sphi 0, %s163
    %s180 = sphi 0, %s164
  $region4: #{conv_gn_relu.1} parent=0 // loop_header_branch
    %14 = sbr.rel (%p12) target = $region8
  $region5: #{conv_gn_relu.1} parent=0 // loop_body
    %s16 = ssub.s32 %s11, 1
    %s17 = ssub.s32 %s11, 2
    %s24 = sadd.s32 1, %s19
    %p25 = scmp.ge.s32.totalorder %s24, 2
    %s26 = scalar_select %p25, 0, %s24
    %s27 = sadd.s32 1, %s18
    %s28 = scalar_select %p25, %s27, %s18
    %p29 = scmp.ge.s32.totalorder %s28, 2
    %s30 = scalar_select %p29, 0, %s28
    %s31 = ssub.s32 %s18, %s30
    %p32 = scmp.eq.s32.totalorder %s31, 0
    %s34 = sadd.s32 %s33, 1
    %s35 = scalar_select %p32, %s33, %s34
    %p38 = pneg %p32
    %p39 = scmp.eq.s32.totalorder %s11, 3
    %p40 = por %p38, %p39
    %p41 = scmp.ne.s32.totalorder %s33, %s36
    %p42 = scmp.eq.s32.totalorder %s11, 0
    %p43 = por %p41, %p42
    %p44 = scmp.ne.s32.totalorder %s33, %s36
    %p45 = scmp.eq.s32.totalorder %s16, 3
    %p46 = por %p44, %p45
    %p47 = scmp.ne.s32.totalorder %s36, %s37
    %p48 = scmp.eq.s32.totalorder %s16, 0
    %p49 = por %p47, %p48
    %p50 = scmp.ne.s32.totalorder %s36, %s37
    %p51 = scmp.eq.s32.totalorder %s17, 3
    %p52 = por %p50, %p51
    %p54 = scmp.ne.s32.totalorder %s37, %s53
    %p55 = scmp.eq.s32.totalorder %s17, 0
    %p56 = por %p54, %p55
    %s57 = ssub.s32 %s19, %s26
    %p58 = scmp.eq.s32.totalorder %s57, 0
    %s60 = sadd.s32 %s59, 1
    %s61 = scalar_select %p58, %s59, %s60
    %p64 = pneg %p58
    %p65 = scmp.eq.s32.totalorder %s11, 3
    %p66 = por %p64, %p65
    %p67 = scmp.ne.s32.totalorder %s59, %s62
    %p68 = scmp.eq.s32.totalorder %s11, 0
    %p69 = por %p67, %p68
    %p70 = scmp.ne.s32.totalorder %s59, %s62
    %p71 = scmp.eq.s32.totalorder %s16, 3
    %p72 = por %p70, %p71
    %p73 = scmp.ne.s32.totalorder %s62, %s63
    %p74 = scmp.eq.s32.totalorder %s16, 0
    %p75 = por %p73, %p74
    %p76 = scmp.ne.s32.totalorder %s62, %s63
    %p77 = scmp.eq.s32.totalorder %s17, 3
    %p78 = por %p76, %p77
    %p80 = scmp.ne.s32.totalorder %s63, %s79
    %p81 = scmp.eq.s32.totalorder %s17, 0
    %p82 = por %p80, %p81
    %s83 = ssub.s32 %s19, %s26
    %p84 = scmp.eq.s32.totalorder %s83, 0
    %s86 = sadd.s32 %s85, 1
    %s87 = scalar_select %p84, %s85, %s86
    %p90 = pneg %p84
    %p91 = scmp.eq.s32.totalorder %s11, 3
    %p92 = por %p90, %p91
    %p93 = scmp.ne.s32.totalorder %s85, %s88
    %p94 = scmp.eq.s32.totalorder %s11, 0
    %p95 = por %p93, %p94
    %p96 = scmp.ne.s32.totalorder %s85, %s88
    %p97 = scmp.eq.s32.totalorder %s16, 3
    %p98 = por %p96, %p97
    %p99 = scmp.ne.s32.totalorder %s88, %s89
    %p100 = scmp.eq.s32.totalorder %s16, 0
    %p101 = por %p99, %p100
    %p102 = scmp.ne.s32.totalorder %s88, %s89
    %p103 = scmp.eq.s32.totalorder %s17, 3
    %p104 = por %p102, %p103
    %p106 = scmp.ne.s32.totalorder %s89, %s105
    %p107 = scmp.eq.s32.totalorder %s17, 0
    %p108 = por %p106, %p107
    %s109 = ssub.s32 %s19, %s26
    %p110 = scmp.eq.s32.totalorder %s109, 0
    %s112 = sadd.s32 %s111, 1
    %s113 = scalar_select %p110, %s111, %s112
    %p116 = pneg %p110
    %p117 = scmp.eq.s32.totalorder %s11, 3
    %p118 = por %p116, %p117
    %p119 = scmp.ne.s32.totalorder %s111, %s114
    %p120 = scmp.eq.s32.totalorder %s11, 0
    %p121 = por %p119, %p120
    %p122 = scmp.ne.s32.totalorder %s111, %s114
    %p123 = scmp.eq.s32.totalorder %s16, 3
    %p124 = por %p122, %p123
    %p125 = scmp.ne.s32.totalorder %s114, %s115
    %p126 = scmp.eq.s32.totalorder %s16, 0
    %p127 = por %p125, %p126
    %p128 = scmp.ne.s32.totalorder %s114, %s115
    %p129 = scmp.eq.s32.totalorder %s17, 3
    %p130 = por %p128, %p129
    %p132 = scmp.ne.s32.totalorder %s115, %s131
    %p133 = scmp.eq.s32.totalorder %s17, 0
    %p134 = por %p132, %p133
    %s136 = sadd.s32 %s135, 1
    %p139 = scmp.eq.s32.totalorder %s11, 3
    %p140 = scmp.ne.s32.totalorder %s135, %s137
    %p141 = scmp.eq.s32.totalorder %s11, 0
    %p142 = por %p140, %p141
    %p143 = scmp.ne.s32.totalorder %s135, %s137
    %p144 = scmp.eq.s32.totalorder %s16, 3
    %p145 = por %p143, %p144
    %p146 = scmp.ne.s32.totalorder %s137, %s138
    %p147 = scmp.eq.s32.totalorder %s16, 0
    %p148 = por %p146, %p147
    %p149 = scmp.ne.s32.totalorder %s137, %s138
    %p150 = scmp.eq.s32.totalorder %s17, 3
    %p151 = por %p149, %p150
    %p153 = scmp.ne.s32.totalorder %s138, %s152
    %p154 = scmp.eq.s32.totalorder %s17, 0
    %p155 = por %p153, %p154
    %s156 = ssub.s32 %s18, %s30
    %s157 = ssub.s32 %s19, %s26
    %s158 = sor.u32 %s156, %s157
    %p159 = scmp.eq.s32.totalorder %s158, 0
    %s161 = sadd.s32 %s160, 1
    %s162 = scalar_select %p159, %s160, %s161
    %p165 = pneg %p159
    %p166 = scmp.eq.s32.totalorder %s11, 3
    %p167 = por %p165, %p166
    %p168 = scmp.ne.s32.totalorder %s160, %s163
    %p169 = scmp.eq.s32.totalorder %s11, 0
    %p170 = por %p168, %p169
    %p171 = scmp.ne.s32.totalorder %s160, %s163
    %p172 = scmp.eq.s32.totalorder %s16, 3
    %p173 = por %p171, %p172
    %p174 = scmp.ne.s32.totalorder %s163, %s164
    %p175 = scmp.eq.s32.totalorder %s16, 0
    %p176 = por %p174, %p175
    %p177 = scmp.ne.s32.totalorder %s163, %s164
    %p178 = scmp.eq.s32.totalorder %s17, 3
    %p179 = por %p177, %p178
    %p181 = scmp.ne.s32.totalorder %s164, %s180
    %p182 = scmp.eq.s32.totalorder %s17, 0
    %p183 = por %p181, %p182
    %p184 = scmp.le.s32.totalorder 1, %s11
    %p185 = scmp.lt.s32.totalorder %s11, 5
    %p186 = pnand %p184, %p185
    %p187 = pneg %p186
    // Predicated region
    $region9: #{conv_gn_relu.1} parent=5 // pred_check
      _
    $region10: #{conv_gn_relu.1} parent=5 // pred_check_branch
      %189 = sbr.rel (%p186) target = $region12
    $region11: #{conv_gn_relu.1} parent=5 // pred_region
      %s190 = ssub.s32 %s11, 1
      // Predicated region
      $region13: #{conv_gn_relu.1} parent=11 // pred_check
        %p191 = pneg %p148
      $region14: #{conv_gn_relu.1} parent=11 // pred_check_branch
        %193 = sbr.rel (%p191) target = $region16
      $region15: #{conv_gn_relu.1} parent=11 // pred_region
        _
      $region16: #{conv_gn_relu.1} parent=11 // pred_fallthru
        _
    $region12: #{conv_gn_relu.1} parent=5 // pred_fallthru
      _
    %p194 = scmp.lt.s32.totalorder %s11, 4
    // Predicated region
    $region17: #{conv_gn_relu.1} parent=5 // pred_check
      %p195 = pneg %p194
    $region18: #{conv_gn_relu.1} parent=5 // pred_check_branch
      %197 = sbr.rel (%p195) target = $region20
    $region19: #{conv_gn_relu.1} parent=5 // pred_region
      // Predicated region
      $region21: #{conv_gn_relu.1} parent=19 // pred_check
        %p198 = pneg %p43
      $region22: #{conv_gn_relu.1} parent=19 // pred_check_branch
        %200 = sbr.rel (%p198) target = $region24
      $region23: #{conv_gn_relu.1} parent=19 // pred_region
        %p201 = scmp.lt.s32.totalorder %s18, 1
        %s202 = scalar_select %p201, %s18, 1
        %s203 = smul.addr %s202, 3
        %s204 = smul.addr %s203, 4
        %s205 = scalar_lea.vmem %s0, %s204
      $region24: #{conv_gn_relu.1} parent=19 // pred_fallthru
        _
      // Predicated region
      $region25: #{conv_gn_relu.1} parent=19 // pred_check
        %p206 = pneg %p69
      $region26: #{conv_gn_relu.1} parent=19 // pred_check_branch
        %208 = sbr.rel (%p206) target = $region28
      $region27: #{conv_gn_relu.1} parent=19 // pred_region
        %p209 = scmp.lt.s32.totalorder %s19, 1
        %s210 = scalar_select %p209, %s19, 1
        %s211 = smul.addr %s210, 4
        %s212 = scalar_lea.vmem %s1, %s211
      $region28: #{conv_gn_relu.1} parent=19 // pred_fallthru
        _
      // Predicated region
      $region29: #{conv_gn_relu.1} parent=19 // pred_check
        %p213 = pneg %p95
      $region30: #{conv_gn_relu.1} parent=19 // pred_check_branch
        %215 = sbr.rel (%p213) target = $region32
      $region31: #{conv_gn_relu.1} parent=19 // pred_region
        %p216 = scmp.lt.s32.totalorder %s19, 1
        %s217 = scalar_select %p216, %s19, 1
        %s218 = smul.addr %s217, 8
        %s219 = scalar_lea.vmem %s2, %s218
      $region32: #{conv_gn_relu.1} parent=19 // pred_fallthru
        _
      // Predicated region
      $region33: #{conv_gn_relu.1} parent=19 // pred_check
        %p220 = pneg %p121
      $region34: #{conv_gn_relu.1} parent=19 // pred_check_branch
        %222 = sbr.rel (%p220) target = $region36
      $region35: #{conv_gn_relu.1} parent=19 // pred_region
        %p223 = scmp.lt.s32.totalorder %s19, 1
        %s224 = scalar_select %p223, %s19, 1
        %s225 = smul.addr %s224, 8
        %s226 = scalar_lea.vmem %s3, %s225
      $region36: #{conv_gn_relu.1} parent=19 // pred_fallthru
        _
    $region20: #{conv_gn_relu.1} parent=5 // pred_fallthru
      _
    %p227 = scmp.le.s32.totalorder 1, %s11
    %p228 = scmp.lt.s32.totalorder %s11, 5
    %p229 = pnand %p227, %p228
    %p230 = pneg %p229
    // Predicated region
    $region37: #{conv_gn_relu.1} parent=5 // pred_check
      _
    $region38: #{conv_gn_relu.1} parent=5 // pred_check_branch
      %232 = sbr.rel (%p229) target = $region40
    $region39: #{conv_gn_relu.1} parent=5 // pred_region
      %s233 = ssub.s32 %s11, 1
      %p234 = scmp.lt.s32.totalorder %s20, 1
      %s235 = scalar_select %p234, %s20, 1
      %s236 = smul.addr %s235, 3
      %s237 = smul.addr %s236, 4
      %s238 = scalar_lea.vmem %s0, %s237
      %p239 = pneg %p49
      %p240 = pneg %p46
      %p241 = scmp.lt.s32.totalorder %s21, 1
      %s242 = scalar_select %p241, %s21, 1
      %s243 = smul.addr %s242, 4
      %s244 = scalar_lea.vmem %s1, %s243
      %p245 = pneg %p75
      %p246 = pneg %p72
      %p247 = scmp.lt.s32.totalorder %s21, 1
      %s248 = scalar_select %p247, %s21, 1
      %s249 = smul.addr %s248, 8
      %s250 = scalar_lea.vmem %s2, %s249
      %p251 = pneg %p101
      %p252 = pneg %p98
      %p253 = scmp.lt.s32.totalorder %s21, 1
      %s254 = scalar_select %p253, %s21, 1
      %s255 = smul.addr %s254, 8
      %s256 = scalar_lea.vmem %s3, %s255
      %p257 = pneg %p127
      %p258 = pneg %p124
      %p259 = pneg %p148
      %p260 = pneg %p145
      %p261 = pneg %p176
      %p262 = pneg %p173
      %p263 = scmp.lt.s32.totalorder %s20, 1
      %s264 = scalar_select %p263, %s20, 1
      %p265 = scmp.lt.s32.totalorder %s21, 1
      %s266 = scalar_select %p265, %s21, 1
      %s267 = smul.addr %s266, 2
      %s268 = smul.addr %s264, 4
      %s269 = sadd.s32 %s267, %s268
      %s270 = smul.addr %s269, 8
      %s271 = scalar_lea.vmem %s5, %s270
      %p272 = scmp.lt.s32.totalorder %s20, 1
      %s273 = scalar_select %p272, %s20, 1
      %s274 = smul.addr %s273, 3
      %s275 = smul.addr %s274, 4
      %s276 = scalar_lea.vmem %s0, %s275
      %p277 = scmp.lt.s32.totalorder %s21, 1
      %s278 = scalar_select %p277, %s21, 1
      %s279 = smul.addr %s278, 4
      %s280 = scalar_lea.vmem %s1, %s279
      %p281 = scmp.lt.s32.totalorder %s21, 1
      %s282 = scalar_select %p281, %s21, 1
      %s283 = smul.addr %s282, 8
      %s284 = scalar_lea.vmem %s2, %s283
      %p285 = scmp.lt.s32.totalorder %s21, 1
      %s286 = scalar_select %p285, %s21, 1
      %s287 = smul.addr %s286, 8
      %s288 = scalar_lea.vmem %s3, %s287
      %p289 = scmp.lt.s32.totalorder %s20, 1
      %s290 = scalar_select %p289, %s20, 1
      %p291 = scmp.lt.s32.totalorder %s21, 1
      %s292 = scalar_select %p291, %s21, 1
      %s293 = smul.addr %s292, 2
      %s294 = smul.addr %s290, 4
      %s295 = sadd.s32 %s293, %s294
      %s296 = smul.addr %s295, 8
      %s297 = scalar_lea.vmem %s5, %s296
      %p299 = scmp.eq.s32.totalorder %s21, 0
      // Predicated region
      $region41: #{conv_gn_relu.1} parent=39 // pred_check
        %p300 = pneg %p299
      $region42: #{conv_gn_relu.1} parent=39 // pred_check_branch
        %302 = sbr.rel (%p300) target = $region44
      $region43: #{conv_gn_relu.1} parent=39 // pred_region
        %v303 = vld [vmem:[%s276] sm:$0xff]
        %v304 = vld [vmem:[%s4] sm:$0x5]
        %v307 = vunpack.c.l.s4 1983009808
        %v308 = vunpack.c.0.s8 %v307
        %v309 = vlaneseq
        %v310 = vshrl.u32 %v309, 7
        %v311 = vsub.s32 %v308, %v310
        %v312 = vrot.slane %v304, %v311
        %v313 = vcombine.high %v312, %v312
        %v315 = vpack.i.b16 %v312, %v312
        %v317 = vlaneseq
        %v318 = vshrl.u32 %v317, 7
        %v319 = vsub.s32 0, %v318
        %v320 = vrot.slane %v315, %v319
        %v322 = vpack.i.b16 %v313, %v313
        %v324 = vlaneseq
        %v325 = vshrl.u32 %v324, 7
        %v326 = vsub.s32 0, %v325
        %v327 = vrot.slane %v322, %v326
        %v330 = vunpack.c.l.b16 %v320
        %v331 = vunpack.c.l.b16 %v327
        %v332 = vpack.c.b16 %v331, %v330
        %v334 = vmul.bf16 %v303, %v332
        %335 = vst [vmem:[#allocation2] sm:$0xff] %v334
        %v336 = vld [vmem:[%s276] sm:$0xff]
        %v337 = vld [vmem:[%s276 + $0x8] sm:$0xf]
        %340 = vrot.lane.b32.xlu0 %v336, 127
        %v341 = vpop.permute.xlu0 %340
        %342 = vrot.lane.b32.xlu0 %v337, 127
        %v343 = vpop.permute.xlu0 %342
        %v344 = vrot.slane %v341, 4
        %v345 = vrot.slane %v343, 4
        %vm346 = vcmask 1043456
        %v347 = vsel %vm346, %v344, %v345
        %vm348 = vcmask 1039360
        %v349 = vsel %vm348, %v341, %v347
        %351 = vst [vmem:[#allocation2 + $0x8] sm:$0xff] %v349
        %v352 = vld [vmem:[%s276] sm:$0xff]
        %v353 = vld [vmem:[%s276 + $0x8] sm:$0xf]
        %v354 = vld [vmem:[%s4] sm:$0xa]
        %v357 = vunpack.c.l.s4 1983009808
        %v358 = vunpack.c.0.s8 %v357
        %v359 = vlaneseq
        %v360 = vshrl.u32 %v359, 7
        %v361 = vsub.s32 %v358, %v360
        %v362 = vrot.slane %v354, %v361
        %v363 = vcombine.high %v362, %v362
        %v365 = vpack.i.b16 %v362, %v362
        %v367 = vlaneseq
        %v368 = vshrl.u32 %v367, 7
        %v369 = vsub.s32 1, %v368
        %v370 = vrot.slane %v365, %v369
        %v372 = vpack.i.b16 %v363, %v363
        %v374 = vlaneseq
        %v375 = vshrl.u32 %v374, 7
        %v376 = vsub.s32 1, %v375
        %v377 = vrot.slane %v372, %v376
        %v380 = vunpack.c.l.b16 %v370
        %v381 = vunpack.c.l.b16 %v377
        %v382 = vpack.c.b16 %v381, %v380
        %383 = vrot.lane.b32.xlu0 %v382, 2
        %v384 = vpop.permute.xlu0 %383
        %v385 = vrot.slane %v384, 4
        %vm386 = vcmask 15360
        %v387 = vsel %vm386, %v385, %v384
        %v390 = vmul.bf16 %v352, %v387
        %v391 = vmul.bf16 %v353, %v385
        %394 = vrot.lane.b32.xlu0 %v390, 126
        %v395 = vpop.permute.xlu0 %394
        %396 = vrot.lane.b32.xlu0 %v391, 126
        %v397 = vpop.permute.xlu0 %396
        %v398 = vrot.slane %v395, 4
        %v399 = vrot.slane %v397, 4
        %v400 = vsel %vm346, %v398, %v399
        %vm401 = vcmask 1031168
        %v402 = vsel %vm401, %v395, %v400
        %404 = vst [vmem:[#allocation2 + $0x10] sm:$0xff] %v402
        %v405 = vld [vmem:[%s276] sm:$0xff]
        %v406 = vld [vmem:[%s276 + $0x8] sm:$0xf]
        %v407 = vld [vmem:[%s4] sm:$0x5]
        %v410 = vunpack.c.l.s4 1983009808
        %v411 = vunpack.c.0.s8 %v410
        %v412 = vlaneseq
        %v413 = vshrl.u32 %v412, 7
        %v414 = vsub.s32 %v411, %v413
        %v415 = vrot.slane %v407, %v414
        %v416 = vcombine.high %v415, %v415
        %v418 = vpack.i.b16 %v415, %v415
        %v420 = vlaneseq
        %v421 = vshrl.u32 %v420, 7
        %v422 = vsub.s32 0, %v421
        %v423 = vrot.slane %v418, %v422
        %v425 = vpack.i.b16 %v416, %v416
        %v427 = vlaneseq
        %v428 = vshrl.u32 %v427, 7
        %v429 = vsub.s32 0, %v428
        %v430 = vrot.slane %v425, %v429
        %v433 = vunpack.c.l.b16 %v423
        %v434 = vunpack.c.l.b16 %v430
        %v435 = vpack.c.b16 %v434, %v433
        %436 = vrot.lane.b32.xlu0 %v435, 16
        %v437 = vpop.permute.xlu0 %436
        %v438 = vrot.slane %v437, 4
        %vm439 = vcmask 130048
        %v440 = vsel %vm439, %v438, %v437
        %v443 = vmul.bf16 %v405, %v440
        %v444 = vmul.bf16 %v406, %v438
        %447 = vrot.lane.b32.xlu0 %v443, 112
        %v448 = vpop.permute.xlu0 %447
        %449 = vrot.lane.b32.xlu0 %v444, 112
        %v450 = vpop.permute.xlu0 %449
        %v451 = vrot.slane %v448, 4
        %v452 = vrot.slane %v450, 4
        %v453 = vsel %vm346, %v451, %v452
        %vm454 = vcmask 916480
        %v455 = vsel %vm454, %v448, %v453
        %457 = vst [vmem:[#allocation2 + $0x18] sm:$0xff] %v455
        %v458 = vld [vmem:[%s276] sm:$0xff]
        %v459 = vld [vmem:[%s276 + $0x8] sm:$0xf]
        %462 = vrot.lane.b32.xlu0 %v458, 111
        %v463 = vpop.permute.xlu0 %462
        %464 = vrot.lane.b32.xlu0 %v459, 111
        %v465 = vpop.permute.xlu0 %464
        %v466 = vrot.slane %v463, 4
        %v467 = vrot.slane %v465, 4
        %v468 = vsel %vm346, %v466, %v467
        %vm469 = vcmask 908288
        %v470 = vsel %vm469, %v463, %v468
        %472 = vst [vmem:[#allocation2 + $0x20] sm:$0xff] %v470
        %v473 = vld [vmem:[%s276] sm:$0xff]
        %v474 = vld [vmem:[%s276 + $0x8] sm:$0xf]
        %v475 = vld [vmem:[%s4] sm:$0xa]
        %v478 = vunpack.c.l.s4 1983009808
        %v479 = vunpack.c.0.s8 %v478
        %v480 = vlaneseq
        %v481 = vshrl.u32 %v480, 7
        %v482 = vsub.s32 %v479, %v481
        %v483 = vrot.slane %v475, %v482
        %v484 = vcombine.high %v483, %v483
        %v486 = vpack.i.b16 %v483, %v483
        %v488 = vlaneseq
        %v489 = vshrl.u32 %v488, 7
        %v490 = vsub.s32 1, %v489
        %v491 = vrot.slane %v486, %v490
        %v493 = vpack.i.b16 %v484, %v484
        %v495 = vlaneseq
        %v496 = vshrl.u32 %v495, 7
        %v497 = vsub.s32 1, %v496
        %v498 = vrot.slane %v493, %v497
        %v501 = vunpack.c.l.b16 %v491
        %v502 = vunpack.c.l.b16 %v498
        %v503 = vpack.c.b16 %v502, %v501
        %504 = vrot.lane.b32.xlu0 %v503, 18
        %v505 = vpop.permute.xlu0 %504
        %v506 = vrot.slane %v505, 4
        %vm507 = vcmask 146432
        %v508 = vsel %vm507, %v506, %v505
        %v511 = vmul.bf16 %v473, %v508
        %v512 = vmul.bf16 %v474, %v506
        %515 = vrot.lane.b32.xlu0 %v511, 110
        %v516 = vpop.permute.xlu0 %515
        %517 = vrot.lane.b32.xlu0 %v512, 110
        %v518 = vpop.permute.xlu0 %517
        %v519 = vrot.slane %v516, 4
        %v520 = vrot.slane %v518, 4
        %v521 = vsel %vm346, %v519, %v520
        %vm522 = vcmask 900096
        %v523 = vsel %vm522, %v516, %v521
        %525 = vst [vmem:[#allocation2 + $0x28] sm:$0xff] %v523
        %v526 = vld [vmem:[%s276] sm:$0xff]
        %v527 = vld [vmem:[%s276 + $0x8] sm:$0xf]
        %v528 = vld [vmem:[%s4] sm:$0x5]
        %v531 = vunpack.c.l.s4 1983009808
        %v532 = vunpack.c.0.s8 %v531
        %v533 = vlaneseq
        %v534 = vshrl.u32 %v533, 7
        %v535 = vsub.s32 %v532, %v534
        %v536 = vrot.slane %v528, %v535
        %v537 = vcombine.high %v536, %v536
        %v539 = vpack.i.b16 %v536, %v536
        %v541 = vlaneseq
        %v542 = vshrl.u32 %v541, 7
        %v543 = vsub.s32 0, %v542
        %v544 = vrot.slane %v539, %v543
        %v546 = vpack.i.b16 %v537, %v537
        %v548 = vlaneseq
        %v549 = vshrl.u32 %v548, 7
        %v550 = vsub.s32 0, %v549
        %v551 = vrot.slane %v546, %v550
        %v554 = vunpack.c.l.b16 %v544
        %v555 = vunpack.c.l.b16 %v551
        %v556 = vpack.c.b16 %v555, %v554
        %557 = vrot.lane.b32.xlu0 %v556, 32
        %v558 = vpop.permute.xlu0 %557
        %v559 = vrot.slane %v558, 4
        %vm560 = vcmask 261120
        %v561 = vsel %vm560, %v559, %v558
        %v564 = vmul.bf16 %v526, %v561
        %v565 = vmul.bf16 %v527, %v559
        %568 = vrot.lane.b32.xlu0 %v564, 96
        %v569 = vpop.permute.xlu0 %568
        %570 = vrot.lane.b32.xlu0 %v565, 96
        %v571 = vpop.permute.xlu0 %570
        %v572 = vrot.slane %v569, 4
        %v573 = vrot.slane %v571, 4
        %v574 = vsel %vm346, %v572, %v573
        %vm575 = vcmask 785408
        %v576 = vsel %vm575, %v569, %v574
        %578 = vst [vmem:[#allocation2 + $0x30] sm:$0xff] %v576
        %v579 = vld [vmem:[%s276] sm:$0xff]
        %v580 = vld [vmem:[%s276 + $0x8] sm:$0xf]
        %583 = vrot.lane.b32.xlu0 %v579, 95
        %v584 = vpop.permute.xlu0 %583
        %585 = vrot.lane.b32.xlu0 %v580, 95
        %v586 = vpop.permute.xlu0 %585
        %v587 = vrot.slane %v584, 4
        %v588 = vrot.slane %v586, 4
        %v589 = vsel %vm346, %v587, %v588
        %vm590 = vcmask 777216
        %v591 = vsel %vm590, %v584, %v589
        %593 = vst [vmem:[#allocation2 + $0x38] sm:$0xff] %v591
        %v594 = vld [vmem:[%s276] sm:$0xff]
        %v595 = vld [vmem:[%s276 + $0x8] sm:$0xf]
        %v596 = vld [vmem:[%s4] sm:$0xa]
        %v599 = vunpack.c.l.s4 1983009808
        %v600 = vunpack.c.0.s8 %v599
        %v601 = vlaneseq
        %v602 = vshrl.u32 %v601, 7
        %v603 = vsub.s32 %v600, %v602
        %v604 = vrot.slane %v596, %v603
        %v605 = vcombine.high %v604, %v604
        %v607 = vpack.i.b16 %v604, %v604
        %v609 = vlaneseq
        %v610 = vshrl.u32 %v609, 7
        %v611 = vsub.s32 1, %v610
        %v612 = vrot.slane %v607, %v611
        %v614 = vpack.i.b16 %v605, %v605
        %v616 = vlaneseq
        %v617 = vshrl.u32 %v616, 7
        %v618 = vsub.s32 1, %v617
        %v619 = vrot.slane %v614, %v618
        %v622 = vunpack.c.l.b16 %v612
        %v623 = vunpack.c.l.b16 %v619
        %v624 = vpack.c.b16 %v623, %v622
        %625 = vrot.lane.b32.xlu0 %v624, 34
        %v626 = vpop.permute.xlu0 %625
        %v627 = vrot.slane %v626, 4
        %vm628 = vcmask 277504
        %v629 = vsel %vm628, %v627, %v626
        %v632 = vmul.bf16 %v594, %v629
        %v633 = vmul.bf16 %v595, %v627
        %636 = vrot.lane.b32.xlu0 %v632, 94
        %v637 = vpop.permute.xlu0 %636
        %638 = vrot.lane.b32.xlu0 %v633, 94
        %v639 = vpop.permute.xlu0 %638
        %v640 = vrot.slane %v637, 4
        %v641 = vrot.slane %v639, 4
        %v642 = vsel %vm346, %v640, %v641
        %vm643 = vcmask 769024
        %v644 = vsel %vm643, %v637, %v642
        %646 = vst [vmem:[#allocation2 + $0x40] sm:$0xff] %v644
      $region44: #{conv_gn_relu.1} parent=39 // pred_fallthru
        _
      %v647 = vld [vmem:[%s280] sm:$0xf]
      %v648 = vld [vmem:[#allocation2] sm:$0xff]
      %v649 = vld [vmem:[#allocation2 + $0x8] sm:$0xff]
      %v650 = vld [vmem:[#allocation2 + $0x10] sm:$0xff]
      %v651 = vld [vmem:[#allocation2 + $0x18] sm:$0xff]
      %v652 = vld [vmem:[#allocation2 + $0x20] sm:$0xff]
      %v653 = vld [vmem:[#allocation2 + $0x28] sm:$0xff]
      %v654 = vld [vmem:[#allocation2 + $0x30] sm:$0xff]
      %v655 = vld [vmem:[#allocation2 + $0x38] sm:$0xff]
      %v656 = vld [vmem:[#allocation2 + $0x40] sm:$0xff]
      %v666 = vunpack.c.l.b16 %v648
      %v667 = vunpack.c.h.b16 %v648
      %v668 = vunpack.c.l.b16 %v649
      %v669 = vunpack.c.h.b16 %v649
      %v670 = vunpack.c.l.b16 %v650
      %v671 = vunpack.c.h.b16 %v650
      %v672 = vunpack.c.l.b16 %v651
      %v673 = vunpack.c.h.b16 %v651
      %v674 = vunpack.c.l.b16 %v652
      %v675 = vunpack.c.h.b16 %v652
      %v676 = vunpack.c.l.b16 %v653
      %v677 = vunpack.c.h.b16 %v653
      %v678 = vunpack.c.l.b16 %v654
      %v679 = vunpack.c.h.b16 %v654
      %v680 = vunpack.c.l.b16 %v655
      %v681 = vunpack.c.h.b16 %v655
      %v682 = vunpack.c.l.b16 %v656
      %v683 = vunpack.c.h.b16 %v656
      %v684 = vpack.c.b16 %v668, %v666
      %v685 = vpack.c.b16 %v669, %v667
      %v686 = vpack.c.b16 %v672, %v670
      %v687 = vpack.c.b16 %v673, %v671
      %v688 = vpack.c.b16 %v676, %v674
      %v689 = vpack.c.b16 %v677, %v675
      %v690 = vpack.c.b16 %v680, %v678
      %v691 = vpack.c.b16 %v681, %v679
      %v692 = vpack.c.b16 %v682, %v682
      %v693 = vpack.c.b16 %v683, %v683
      %vm702 = vcmask 588800
      %v704 = vsel %vm702, %v647, 0
      %vm706 = vcmask 1043456
      %v708 = vsel %vm706, %v692, 0
      %v711 = vsel %vm706, %v693, 0
      %713 = vmatprep.subr.bf16.mxu0 0
      %714 = vmatpush1.bf16.msra.mxu0 0
      %715 = vmatprep.subr.bf16.mxu0 0
      %716 = vmatpush1.bf16.msra.mxu0 0
      %717 = vmatprep.subr.bf16.mxu0 0
      %718 = vmatpush1.bf16.msra.mxu0 0
      %719 = vmatprep.subr.bf16.mxu0 %v711
      %720 = vmatpush1.bf16.msra.mxu0 %v708
      %721 = vmatprep.subr.bf16.mxu0 %v691
      %722 = vmatpush1.bf16.msra.mxu0 %v690
      %723 = vmatprep.subr.bf16.mxu0 %v689
      %724 = vmatpush1.bf16.msra.mxu0 %v688
      %725 = vmatprep.subr.bf16.mxu0 %v687
      %726 = vmatpush1.bf16.msra.mxu0 %v686
      %727 = vmatprep.subr.bf16.mxu0 %v685
      %728 = vmatpush1.bf16.msra.mxu0 %v684
      %729 = vmatprep.subr.bf16.mxu0 0
      %730 = vmatpush2.bf16.msra.mxu0 0
      %731 = vmatprep.subr.bf16.mxu0 0
      %732 = vmatpush2.bf16.msra.mxu0 0
      %733 = vmatprep.subr.bf16.mxu0 0
      %734 = vmatpush2.bf16.msra.mxu0 0
      %735 = vmatprep.subr.bf16.mxu0 0
      %736 = vmatpush2.bf16.msra.mxu0 0
      %737 = vmatprep.subr.bf16.mxu0 0
      %738 = vmatpush2.bf16.msra.mxu0 0
      %739 = vmatprep.subr.bf16.mxu0 0
      %740 = vmatpush2.bf16.msra.mxu0 0
      %741 = vmatprep.subr.bf16.mxu0 0
      %742 = vmatpush2.bf16.msra.mxu0 0
      %743 = vmatprep.subr.bf16.mxu0 0
      %744 = vmatpush2.bf16.msra.mxu0 0
      %745 = vmatprep.mubr.bf16.mxu0 0
      %746 = vmatmul.mubr.bf16.gmra.mxu0 %v704
      %v747 = vpop.f32.mrf.mxu0
      %v748 = vadd.f32 0.0, %v747
      %v749 = vpop.f32.mrf.mxu0
      %v750 = vadd.f32 0.0, %v749
      %v751 = vpop.f32.mrf.mxu0
      %v752 = vpop.f32.mrf.mxu0
      %753 = vdwg.mxu0
      %v754 = vadd.f32 %v748, %v750
      %755 = vadd.xlane.f32.xlu0 %v754
      %v756 = vpop.xlane.xlu0 %755
      %v757 = vrot.slane %v756, 4
      %v758 = vadd.f32 %v756, %v757
      %v759 = vrot.slane %v758, 2
      %v760 = vadd.f32 %v758, %v759
      %v761 = vrot.slane %v760, 1
      %v762 = vadd.f32 %v760, %v761
      %v763 = vmul.f32 %v748, %v748
      %v764 = vmul.f32 %v750, %v750
      %v765 = vadd.f32 %v763, %v764
      %766 = vadd.xlane.f32.xlu0 %v765
      %v767 = vpop.xlane.xlu0 %766
      %v768 = vrot.slane %v767, 4
      %v769 = vadd.f32 %v767, %v768
      %v770 = vrot.slane %v769, 2
      %v771 = vadd.f32 %v769, %v770
      %v772 = vrot.slane %v771, 1
      %v773 = vadd.f32 %v771, %v772
      %v774 = vmul.f32 %v762, 0.00048828125
      %v775 = vmul.f32 %v773, 0.00048828125
      %v776 = vmul.f32 %v774, %v774
      %v777 = vsub.f32 %v775, %v776
      %v778 = vmax.f32 %v777, 0.0
      %v779 = vadd.f32 %v778, 1e-05
      %v780 = vrsqrt.pop %v779
      %v781 = vld [vmem:[%s284] sm:$0xff]
      %v782 = vmul.f32 %v781, %v780
      %v783 = vld [vmem:[%s288] sm:$0xff]
      %v784 = vmul.f32 %v774, %v782
      %v785 = vsub.f32 %v783, %v784
      %787 = vset.pattern.permute.xlu0 0
      %788 = vperm.xlu0 %787, %v782
      %v789 = vpop.permute.xlu0 %788
      %v791 = vmul.f32 %v748, %v789
      %v792 = vmul.f32 %v750, %v789
      %794 = vset.pattern.permute.xlu0 0
      %795 = vperm.xlu0 %794, %v785
      %v796 = vpop.permute.xlu0 %795
      %v798 = vadd.f32 %v791, %v796
      %v799 = vadd.f32 %v792, %v796
      %v800 = vmax.f32 %v798, 0.0
      %v801 = vmax.f32 %v799, 0.0
      %802 = vst [vmem:[%s297] sm:$0xff] %v800
      %803 = vst [vmem:[%s297 + $0x8] sm:$0xff] %v801
      %p804 = scmp.lt.s32.totalorder %s20, 1
      %s805 = scalar_select %p804, %s20, 1
      %p806 = scmp.lt.s32.totalorder %s21, 1
      %s807 = scalar_select %p806, %s21, 1
      %s808 = smul.addr %s807, 2
      %s809 = smul.addr %s805, 4
      %s810 = sadd.s32 %s808, %s809
      %s811 = smul.addr %s810, 8
      %s812 = scalar_lea.vmem %s5, %s811
      // Predicated region
      $region45: #{conv_gn_relu.1} parent=39 // pred_check
        %p813 = pneg %p173
      $region46: #{conv_gn_relu.1} parent=39 // pred_check_branch
        %815 = sbr.rel (%p813) target = $region48
      $region47: #{conv_gn_relu.1} parent=39 // pred_region
        _
      $region48: #{conv_gn_relu.1} parent=39 // pred_fallthru
        _
    $region40: #{conv_gn_relu.1} parent=5 // pred_fallthru
      _
    %p816 = scmp.le.s32.totalorder 2, %s11
    // Predicated region
    $region49: #{conv_gn_relu.1} parent=5 // pred_check
      %p817 = pneg %p816
    $region50: #{conv_gn_relu.1} parent=5 // pred_check_branch
      %819 = sbr.rel (%p817) target = $region52
    $region51: #{conv_gn_relu.1} parent=5 // pred_region
      %s820 = ssub.s32 %s11, 2
      // Predicated region
      $region53: #{conv_gn_relu.1} parent=51 // pred_check
        %p821 = pneg %p179
      $region54: #{conv_gn_relu.1} parent=51 // pred_check_branch
        %823 = sbr.rel (%p821) target = $region56
      $region55: #{conv_gn_relu.1} parent=51 // pred_region
        %p824 = scmp.lt.s32.totalorder %s22, 1
        %s825 = scalar_select %p824, %s22, 1
        %p826 = scmp.lt.s32.totalorder %s23, 1
        %s827 = scalar_select %p826, %s23, 1
        %s828 = smul.addr %s827, 2
        %s829 = smul.addr %s825, 4
        %s830 = sadd.s32 %s828, %s829
        %s831 = smul.addr %s830, 8
        %s832 = scalar_lea.vmem %s5, %s831
      $region56: #{conv_gn_relu.1} parent=51 // pred_fallthru
        _
    $region52: #{conv_gn_relu.1} parent=5 // pred_fallthru
      _
  $region6: #{conv_gn_relu.1} parent=0 // loop_footer
    %s15 = sadd.s32 1, %s11
  $region7: #{conv_gn_relu.1} parent=0 // loop_footer_branch
    %10 = sbr.rel target = $region3
  $region8: #{conv_gn_relu.1} parent=0 // loop_exit
    _

</llo_original>
